<compile_context>
chip_gen: v7x
topology: tpu7x:2x2x1
jax: 0.10.0
libtpu: 0.0.40
codegen_flags: <defaults>
</compile_context>

<pallas_src>
import jax
import jax.numpy as jnp
from jax.experimental import pallas as pl
from jax.experimental.pallas import tpu as pltpu

# ----------------------------- model config ----------------------------------
IMAGE_SIZE = 16
PATCH_SIZE = 4
HIDDEN = 32
BATCH = 2

NUM_PATCHES = (IMAGE_SIZE // PATCH_SIZE) ** 2        # S = 16
PATCH_DIM = 3 * PATCH_SIZE * PATCH_SIZE              # 48 (= C * P * P)
LANES = 128                                          # TPU vreg lane width
K_PAD = 64                                           # padded per-token contraction dim
TOKENS_PER_ROW = LANES // HIDDEN                     # 4 tokens packed per 128-lane row
MAX_ROW_BLOCK = 512                                  # cap per grid step (VMEM is tiny anyway)


# ----------------------------- the kernel ------------------------------------
def patch_embed_kernel(rows_ref, w_ref, pos_ref, o_ref):
    # rows_ref: (RB, TPR*K_PAD) f32   -- 4 zero-padded patch vectors per row.
    # w_ref:    (TPR*K_PAD, TPR*H) bf16 block-diagonal patch-embedding weight.
    # pos_ref:  (RB, TPR*H) f32 positional rows (pre-tiled per batch).
    # o_ref:    (RB, TPR*H) f32      -- full unmasked (8,128)-tile-aligned block.
    x = rows_ref[...].astype(jnp.bfloat16)            # VPU cast hides under MXU slack
    y = jnp.dot(x, w_ref[...], preferred_element_type=jnp.float32)
    o_ref[...] = (y + pos_ref[...]).astype(o_ref.dtype)


# ----------------------------- packing helpers --------------------------------
def extract_patches(x_nchw):
    # (B, C, H, W) -> (B, S, C*P*P); inner order (c, ph, pw) matches the Conv2d
    # weight flattening (H, C, P, P) -> (H, C*P*P); patches row-major over (gh, gw),
    # matching `.flatten(2).transpose(-1, -2)` of the conv output.
    B, C, Himg, Wimg = x_nchw.shape
    P = PATCH_SIZE
    gh, gw = Himg // P, Wimg // P
    p = x_nchw.reshape(B, C, gh, P, gw, P)
    p = p.transpose(0, 2, 4, 1, 3, 5).reshape(B, gh * gw, C * P * P)
    return p


def _row_block_for(R):
    # Largest multiple of 8 <= MAX_ROW_BLOCK that covers R in whole blocks.
    rb = min(((R + 7) // 8) * 8, MAX_ROW_BLOCK)
    r_pad = ((R + rb - 1) // rb) * rb
    return rb, r_pad


def pack_patch_embedding_params(conv_w, pos_table, batch):
    """Init-time (cold path) packing of parameters. Call once, reuse per forward.

    conv_w:    (HIDDEN, 3, P, P)  Conv2d weight
    pos_table: (S, HIDDEN)        positional-embedding table
    Returns (w_block bf16 (TPR*K_PAD, TPR*H), pos_rows f32 (R_pad, TPR*H)).
    """
    S, H, K, TPR = NUM_PATCHES, HIDDEN, K_PAD, TOKENS_PER_ROW
    R = batch * S // TPR
    _, r_pad = _row_block_for(R)

    # Weight: (H, C*P*P) -> (48, H) -> pad K to 64 -> block-diagonal (256, 128).
    w = conv_w.reshape(H, PATCH_DIM).T                                   # (48, 32)
    w = jnp.pad(w, ((0, K - PATCH_DIM), (0, 0)))                         # (64, 32)
    w_block = jnp.kron(jnp.eye(TPR, dtype=w.dtype), w).astype(jnp.bfloat16)  # (256, 128)

    # Positional rows: (S, H) -> (S/TPR, 128), tiled per batch, padded to R_pad.
    pos_rows = jnp.tile(pos_table.reshape(S // TPR, TPR * H), (batch, 1))  # (R, 128)
    pos_rows = jnp.pad(pos_rows, ((0, r_pad - R), (0, 0)))                 # (R_pad, 128)
    return w_block, pos_rows.astype(jnp.float32)


# ----------------------------- forward (hot path) ------------------------------
def patch_embedding(x_nchw, w_block, pos_rows):
    """Forward pass. w_block / pos_rows come from pack_patch_embedding_params."""
    B = x_nchw.shape[0]
    S, H, K, TPR = NUM_PATCHES, HIDDEN, K_PAD, TOKENS_PER_ROW
    assert LANES % H == 0 and S % TPR == 0
    R = B * S // TPR
    rb, r_pad = _row_block_for(R)
    assert pos_rows.shape[0] == r_pad, "pos_rows packed for a different batch size"

    # Activations: im2col + K pad (48 -> 64) + pack 4 tokens per 256-lane row.
    patches = extract_patches(x_nchw)                                   # (B, S, 48)
    patches = jnp.pad(patches, ((0, 0), (0, 0), (0, K - PATCH_DIM)))    # (B, S, 64)
    rows = patches.reshape(R, TPR * K)                                  # (R, 256) f32
    if r_pad != R:
        rows = jnp.pad(rows, ((0, r_pad - R), (0, 0)))                  # (R_pad, 256)

    grid = (r_pad // rb,)   # 1 step at B=2; "parallel" so multi-step grids shard
                            # across v7x's two TensorCores for larger batches.
    out = pl.pallas_call(
        patch_embed_kernel,
        out_shape=jax.ShapeDtypeStruct((r_pad, TPR * H), jnp.float32),
        grid=grid,
        in_specs=[
            pl.BlockSpec((rb, TPR * K), lambda i: (i, 0)),
            pl.BlockSpec((TPR * K, TPR * H), lambda i: (0, 0)),   # resident weight
            pl.BlockSpec((rb, TPR * H), lambda i: (i, 0)),
        ],
        out_specs=pl.BlockSpec((rb, TPR * H), lambda i: (i, 0)),
        compiler_params=pltpu.CompilerParams(dimension_semantics=("parallel",)),
    )(rows, w_block, pos_rows)

    # (R, 128) is the bit-identical contiguous layout of (B, S, H): free reshape.
    return out[:R].reshape(B, S, H)


# ------------------- pure-JAX reference (PyTorch-shaped math) -----------------
def reference_forward(x_nchw, conv_w, pos_table):
    patches = extract_patches(x_nchw)                    # (B, S, 48)
    w = conv_w.reshape(HIDDEN, PATCH_DIM).T              # (48, H)
    return patches @ w + pos_table[None]                 # (B, S, H)


# ----------------------------- main -------------------------------------------
if __name__ == "__main__":
    key = jax.random.PRNGKey(0)
    kx, kw, kp = jax.random.split(key, 3)
    x = jax.random.normal(kx, (BATCH, 3, IMAGE_SIZE, IMAGE_SIZE), jnp.float32)
    conv_w = 0.05 * jax.random.normal(kw, (HIDDEN, 3, PATCH_SIZE, PATCH_SIZE),
                                      jnp.float32)
    pos_table = 0.02 * jax.random.normal(kp, (NUM_PATCHES, HIDDEN), jnp.float32)

    # Cold path: pack parameters once (weight kron/pad/cast, pos tiling).
    w_block, pos_rows = pack_patch_embedding_params(conv_w, pos_table, BATCH)
    w_block, pos_rows = jax.block_until_ready((w_block, pos_rows))

    # Hot path: only im2col + kernel.
    out = patch_embedding(x, w_block, pos_rows)
    out = jax.block_until_ready(out)

    ref = reference_forward(x, conv_w, pos_table)
    err = float(jnp.max(jnp.abs(out - ref)))

    assert out.shape == (BATCH, NUM_PATCHES, HIDDEN)
    assert bool(jnp.all(jnp.isfinite(out)))
    # bf16 matmul inputs with f32 accumulation: typical error ~1e-3 on O(0.3) values.
    assert err < 5e-2, f"max abs error vs reference too large: {err}"
    print("KERNEL_OK")
</pallas_src>

<mosaic_0001>
module attributes {stable_mosaic.version = 11 : i64} {
  func.func @patch_embed_kernel(%arg0: i32, %arg1: memref<8x256xf32, #tpu.memory_space<vmem>>, %arg2: memref<256x128xbf16, #tpu.memory_space<vmem>>, %arg3: memref<8x128xf32, #tpu.memory_space<vmem>>, %arg4: memref<8x128xf32, #tpu.memory_space<vmem>>) attributes {dimension_semantics = [#tpu.dimension_semantics<parallel>], iteration_bounds = array<i64: 1>, scalar_prefetch = 0 : i64, scratch_operands = 0 : i64, tpu.core_type = #tpu.core_type<tc>, window_params = [{transform_indices = @transform_0, window_bounds = array<i64: 8, 256>}, {pipeline_mode = #tpu.pipeline_mode<synchronous>, transform_indices = @transform_1, window_bounds = array<i64: 256, 128>}, {transform_indices = @transform_2, window_bounds = array<i64: 8, 128>}, {transform_indices = @transform_3, window_bounds = array<i64: 8, 128>}]} {
    %c0 = arith.constant 0 : index
    %c0_0 = arith.constant 0 : index
    %0 = vector.load %arg1[%c0, %c0_0] : memref<8x256xf32, #tpu.memory_space<vmem>>, vector<8x256xf32>
    %1 = arith.truncf %0 : vector<8x256xf32> to vector<8x256xbf16>
    %c0_1 = arith.constant 0 : index
    %c0_2 = arith.constant 0 : index
    %2 = vector.load %arg2[%c0_1, %c0_2] : memref<256x128xbf16, #tpu.memory_space<vmem>>, vector<256x128xbf16>
    %cst = arith.constant dense<0.000000e+00> : vector<8x128xf32>
    %3 = tpu.matmul %1, %2, %cst {dimension_numbers = #tpu.dot_dimension_numbers<[1], [0], [0], [1], [0, 0, 1, 1], [], []>} : vector<8x256xbf16>, vector<256x128xbf16>, vector<8x128xf32> -> vector<8x128xf32>
    %c0_3 = arith.constant 0 : index
    %c0_4 = arith.constant 0 : index
    %4 = vector.load %arg3[%c0_3, %c0_4] : memref<8x128xf32, #tpu.memory_space<vmem>>, vector<8x128xf32>
    %5 = arith.addf %3, %4 : vector<8x128xf32>
    %c0_5 = arith.constant 0 : index
    %c0_6 = arith.constant 0 : index
    %6 = vector.load %arg4[%c0_5, %c0_6] : memref<8x128xf32, #tpu.memory_space<vmem>>, vector<8x128xf32>
    tpu.vector_store %arg4[%c0_5, %c0_6], %5 {strides = array<i32>} : memref<8x128xf32, #tpu.memory_space<vmem>>, vector<8x128xf32>,
    return
  }
  func.func @transform_0(%arg0: i32) -> (i32, i32) {
    %c0_i32 = arith.constant 0 : i32
    %c0_i32_0 = arith.constant 0 : i32
    return %arg0, %c0_i32 : i32, i32
  }
  func.func @transform_1(%arg0: i32) -> (i32, i32) {
    %c0_i32 = arith.constant 0 : i32
    %c0_i32_0 = arith.constant 0 : i32
    %c0_i32_1 = arith.constant 0 : i32
    return %c0_i32, %c0_i32_0 : i32, i32
  }
  func.func @transform_2(%arg0: i32) -> (i32, i32) {
    %c0_i32 = arith.constant 0 : i32
    %c0_i32_0 = arith.constant 0 : i32
    return %arg0, %c0_i32 : i32, i32
  }
  func.func @transform_3(%arg0: i32) -> (i32, i32) {
    %c0_i32 = arith.constant 0 : i32
    %c0_i32_0 = arith.constant 0 : i32
    return %arg0, %c0_i32 : i32, i32
  }
}

</mosaic_0001>

<llo_original>
// kernel: tpu_custom_call.1
$region0: #{tpu_custom_call.1}
  #allocation0 [shape = 'u32[]', space=smem, size = 0x4, offset = 0x4, fixed_abs, tag = 'smem constant byte address 0x4 - core index']
  #allocation1 [shape = 'u32[144,128]{1,0:T(1,128)}', space=vmem, size = 0x12000, scoped, tag = 'internal scratch']
  %s0 = inlined_call_operand.hbm [shape: f32[8,256], index: 0, kind: input, shape index: {}]
  %s1 = inlined_call_operand.hbm [shape: bf16[256,128], index: 1, kind: input, shape index: {}]
  %s2 = inlined_call_operand.hbm [shape: f32[8,128], index: 2, kind: input, shape index: {}]
  %s3 = inlined_call_operand.hbm [shape: f32[8,128], index: 3, kind: output, shape index: {}]
  %s4 = sld [smem:[#allocation0]]
  $region34: #{tpu_custom_call.1} parent=0
    _
  %s6 = ssub.s32 1, %s4
  %s7 = scalar_select 0, %s6, %s4
  $region1: #{tpu_custom_call.1} parent=0
    #allocation2 [shape = 'u8[8192]{0}', space=vmem, size = 0x2000, scoped, tag = 'input window, operand 0, single buffered']
    #allocation3 [shape = 's32[1]{0}', space=sflag, size = 0x4, scoped, tag = 'scoped memory for tpu_custom_call.1']
    #allocation4 [shape = 's32[1]{0}', space=sflag, size = 0x4, scoped, tag = 'scoped memory for tpu_custom_call.1']
    #allocation5 [shape = 'u8[65536]{0}', space=vmem, size = 0x10000, scoped, tag = 'input window, operand 1, single buffered']
    #allocation6 [shape = 's32[1]{0}', space=sflag, size = 0x4, scoped, tag = 'scoped memory for tpu_custom_call.1']
    #allocation7 [shape = 'u8[4096]{0}', space=vmem, size = 0x1000, scoped, tag = 'input window, operand 2, single buffered']
    #allocation8 [shape = 'u8[4096]{0}', space=vmem, size = 0x1000, scoped, tag = 'output window, operand 0, single buffered']
    %8 = vsyncpa [#allocation3], 0
    %9 = vsyncpa [#allocation6], 0
    %10 = vsyncpa [#allocation4], 0
    // Predicated region
    $region2: #{tpu_custom_call.1} parent=1 // pred_check
      _
    $region3: #{tpu_custom_call.1} parent=1 // pred_check_branch
      %12 = sbr.rel (0) target = $region5
    $region4: #{tpu_custom_call.1} parent=1 // pred_region
      %s14 = ssub.s32 256, 256
      %15 = vsyncadd [#allocation3], %s14
      %s17 = sshll.u32 [#allocation2], 4
      %s18 = int_to_ptr.vmem [resolvable:$true] %s17
      %20 = dma.hbm_to_vmem [thread:$0]  %s0, 256, %s18, [#allocation3]
    $region5: #{tpu_custom_call.1} parent=1 // pred_fallthru
      _
    // Predicated region
    $region6: #{tpu_custom_call.1} parent=1 // pred_check
      _
    $region7: #{tpu_custom_call.1} parent=1 // pred_check_branch
      %22 = sbr.rel (0) target = $region9
    $region8: #{tpu_custom_call.1} parent=1 // pred_region
      %s24 = ssub.s32 2048, 2048
      %25 = vsyncadd [#allocation6], %s24
      %s26 = sshll.u32 [#allocation5], 4
      %s27 = int_to_ptr.vmem [resolvable:$true] %s26
      %32 = dma.hbm_to_vmem [thread:$0]  %s1, 2048, %s27, [#allocation6], 64, 64, 4
    $region9: #{tpu_custom_call.1} parent=1 // pred_fallthru
      _
    // Predicated region
    $region10: #{tpu_custom_call.1} parent=1 // pred_check
      _
    $region11: #{tpu_custom_call.1} parent=1 // pred_check_branch
      %34 = sbr.rel (0) target = $region13
    $region12: #{tpu_custom_call.1} parent=1 // pred_region
      %s36 = ssub.s32 128, 128
      %37 = vsyncadd [#allocation6], %s36
      %s39 = sshll.u32 [#allocation7], 4
      %s40 = int_to_ptr.vmem [resolvable:$true] %s39
      %42 = dma.hbm_to_vmem [thread:$0]  %s2, 128, %s40, [#allocation6]
    $region13: #{tpu_custom_call.1} parent=1 // pred_fallthru
      _
    // Predicated region
    $region14: #{tpu_custom_call.1} parent=1 // pred_check
      _
    $region15: #{tpu_custom_call.1} parent=1 // pred_check_branch
      %44 = sbr.rel (0) target = $region17
    $region16: #{tpu_custom_call.1} parent=1 // pred_region
      %45 = dma.done [#allocation3], 256
    $region17: #{tpu_custom_call.1} parent=1 // pred_fallthru
      _
    // Predicated region
    $region18: #{tpu_custom_call.1} parent=1 // pred_check
      _
    $region19: #{tpu_custom_call.1} parent=1 // pred_check_branch
      %47 = sbr.rel (0) target = $region21
    $region20: #{tpu_custom_call.1} parent=1 // pred_region
      %48 = dma.done [#allocation6], 2048
    $region21: #{tpu_custom_call.1} parent=1 // pred_fallthru
      _
    // Predicated region
    $region22: #{tpu_custom_call.1} parent=1 // pred_check
      _
    $region23: #{tpu_custom_call.1} parent=1 // pred_check_branch
      %50 = sbr.rel (0) target = $region25
    $region24: #{tpu_custom_call.1} parent=1 // pred_region
      %51 = dma.done [#allocation6], 128
    $region25: #{tpu_custom_call.1} parent=1 // pred_fallthru
      _
    %v53 = vld [vmem:[#allocation2] sm:$0xff]
    %v54 = vld [vmem:[#allocation2 + $0x8] sm:$0xff]
    %v55 = vpack.c.bf16 %v53, %v53
    %v56 = vpack.c.bf16 %v54, %v54
    %v57 = vld [vmem:[#allocation5] sm:$0xf]
    %v58 = vld [vmem:[#allocation5 + $0x4] sm:$0xf]
    %v59 = vld [vmem:[#allocation5 + $0x8] sm:$0xf]
    %v60 = vld [vmem:[#allocation5 + $0xc] sm:$0xf]
    %v61 = vld [vmem:[#allocation5 + $0x10] sm:$0xf]
    %v62 = vld [vmem:[#allocation5 + $0x14] sm:$0xf]
    %v63 = vld [vmem:[#allocation5 + $0x18] sm:$0xf]
    %v64 = vld [vmem:[#allocation5 + $0x1c] sm:$0xf]
    %v65 = vld [vmem:[#allocation5 + $0x20] sm:$0xf]
    %v66 = vld [vmem:[#allocation5 + $0x24] sm:$0xf]
    %v67 = vld [vmem:[#allocation5 + $0x28] sm:$0xf]
    %v68 = vld [vmem:[#allocation5 + $0x2c] sm:$0xf]
    %v69 = vld [vmem:[#allocation5 + $0x30] sm:$0xf]
    %v70 = vld [vmem:[#allocation5 + $0x34] sm:$0xf]
    %v71 = vld [vmem:[#allocation5 + $0x38] sm:$0xf]
    %v72 = vld [vmem:[#allocation5 + $0x3c] sm:$0xf]
    %v73 = vld [vmem:[#allocation5 + $0x40] sm:$0xf]
    %v74 = vld [vmem:[#allocation5 + $0x44] sm:$0xf]
    %v75 = vld [vmem:[#allocation5 + $0x48] sm:$0xf]
    %v76 = vld [vmem:[#allocation5 + $0x4c] sm:$0xf]
    %v77 = vld [vmem:[#allocation5 + $0x50] sm:$0xf]
    %v78 = vld [vmem:[#allocation5 + $0x54] sm:$0xf]
    %v79 = vld [vmem:[#allocation5 + $0x58] sm:$0xf]
    %v80 = vld [vmem:[#allocation5 + $0x5c] sm:$0xf]
    %v81 = vld [vmem:[#allocation5 + $0x60] sm:$0xf]
    %v82 = vld [vmem:[#allocation5 + $0x64] sm:$0xf]
    %v83 = vld [vmem:[#allocation5 + $0x68] sm:$0xf]
    %v84 = vld [vmem:[#allocation5 + $0x6c] sm:$0xf]
    %v85 = vld [vmem:[#allocation5 + $0x70] sm:$0xf]
    %v86 = vld [vmem:[#allocation5 + $0x74] sm:$0xf]
    %v87 = vld [vmem:[#allocation5 + $0x78] sm:$0xf]
    %v88 = vld [vmem:[#allocation5 + $0x7c] sm:$0xf]
    %v89 = vld [vmem:[#allocation7] sm:$0xff]
    %v122 = vunpack.c.l.b16 %v57
    %v123 = vunpack.c.l.b16 %v58
    %v124 = vunpack.c.l.b16 %v59
    %v125 = vunpack.c.l.b16 %v60
    %v126 = vunpack.c.l.b16 %v61
    %v127 = vunpack.c.l.b16 %v62
    %v128 = vunpack.c.l.b16 %v63
    %v129 = vunpack.c.l.b16 %v64
    %v130 = vunpack.c.l.b16 %v65
    %v131 = vunpack.c.l.b16 %v66
    %v132 = vunpack.c.l.b16 %v67
    %v133 = vunpack.c.l.b16 %v68
    %v134 = vunpack.c.l.b16 %v69
    %v135 = vunpack.c.l.b16 %v70
    %v136 = vunpack.c.l.b16 %v71
    %v137 = vunpack.c.l.b16 %v72
    %v138 = vunpack.c.l.b16 %v73
    %v139 = vunpack.c.l.b16 %v74
    %v140 = vunpack.c.l.b16 %v75
    %v141 = vunpack.c.l.b16 %v76
    %v142 = vunpack.c.l.b16 %v77
    %v143 = vunpack.c.l.b16 %v78
    %v144 = vunpack.c.l.b16 %v79
    %v145 = vunpack.c.l.b16 %v80
    %v146 = vunpack.c.l.b16 %v81
    %v147 = vunpack.c.l.b16 %v82
    %v148 = vunpack.c.l.b16 %v83
    %v149 = vunpack.c.l.b16 %v84
    %v150 = vunpack.c.l.b16 %v85
    %v151 = vunpack.c.l.b16 %v86
    %v152 = vunpack.c.l.b16 %v87
    %v153 = vunpack.c.l.b16 %v88
    %v154 = vpack.c.b16 %v123, %v122
    %v155 = vpack.c.b16 %v125, %v124
    %v156 = vpack.c.b16 %v127, %v126
    %v157 = vpack.c.b16 %v129, %v128
    %v158 = vpack.c.b16 %v131, %v130
    %v159 = vpack.c.b16 %v133, %v132
    %v160 = vpack.c.b16 %v135, %v134
    %v161 = vpack.c.b16 %v137, %v136
    %v162 = vpack.c.b16 %v139, %v138
    %v163 = vpack.c.b16 %v141, %v140
    %v164 = vpack.c.b16 %v143, %v142
    %v165 = vpack.c.b16 %v145, %v144
    %v166 = vpack.c.b16 %v147, %v146
    %v167 = vpack.c.b16 %v149, %v148
    %v168 = vpack.c.b16 %v151, %v150
    %v169 = vpack.c.b16 %v153, %v152
    %186 = vmatprep.subr.bf16.mxu0 0
    %187 = vmatpush1.bf16.msra.mxu0 %v154
    %188 = vmatprep.subr.bf16.mxu0 0
    %189 = vmatpush1.bf16.msra.mxu0 %v155
    %190 = vmatprep.subr.bf16.mxu0 0
    %191 = vmatpush1.bf16.msra.mxu0 %v156
    %192 = vmatprep.subr.bf16.mxu0 0
    %193 = vmatpush1.bf16.msra.mxu0 %v157
    %194 = vmatprep.subr.bf16.mxu0 0
    %195 = vmatpush1.bf16.msra.mxu0 %v158
    %196 = vmatprep.subr.bf16.mxu0 0
    %197 = vmatpush1.bf16.msra.mxu0 %v159
    %198 = vmatprep.subr.bf16.mxu0 0
    %199 = vmatpush1.bf16.msra.mxu0 %v160
    %200 = vmatprep.subr.bf16.mxu0 0
    %201 = vmatpush1.bf16.msra.mxu0 %v161
    %202 = vmatprep.subr.bf16.mxu0 0
    %203 = vmatpush1.bf16.msra.mxu0 %v162
    %204 = vmatprep.subr.bf16.mxu0 0
    %205 = vmatpush1.bf16.msra.mxu0 %v163
    %206 = vmatprep.subr.bf16.mxu0 0
    %207 = vmatpush1.bf16.msra.mxu0 %v164
    %208 = vmatprep.subr.bf16.mxu0 0
    %209 = vmatpush1.bf16.msra.mxu0 %v165
    %210 = vmatprep.subr.bf16.mxu0 0
    %211 = vmatpush1.bf16.msra.mxu0 %v166
    %212 = vmatprep.subr.bf16.mxu0 0
    %213 = vmatpush1.bf16.msra.mxu0 %v167
    %214 = vmatprep.subr.bf16.mxu0 0
    %215 = vmatpush1.bf16.msra.mxu0 %v168
    %216 = vmatprep.subr.bf16.mxu0 0
    %217 = vmatpush1.bf16.msra.mxu0 %v169
    %218 = vmatprep.mubr.bf16.mxu0 %v56
    %219 = vmatmul.mubr.bf16.gmra.mrb[0].mxu0 %v55
    %v220 = vpop.f32.mrb[0].mxu0
    %v221 = vadd.f32 %v89, %v220
    %v222 = vpop.f32.mrb[0].mxu0
    %v223 = vpop.f32.mrb[0].mxu0
    %v224 = vpop.f32.mrb[0].mxu0
    %225 = vdwg.mxu0
    %226 = vst [vmem:[#allocation8] sm:$0xff] %v221
    // Predicated region
    $region26: #{tpu_custom_call.1} parent=1 // pred_check
      _
    $region27: #{tpu_custom_call.1} parent=1 // pred_check_branch
      %228 = sbr.rel (0) target = $region29
    $region28: #{tpu_custom_call.1} parent=1 // pred_region
      %s230 = ssub.s32 128, 128
      %231 = vsyncadd [#allocation4], %s230
      %s233 = sshll.u32 [#allocation8], 4
      %s234 = int_to_ptr.vmem [resolvable:$true] %s233
      %236 = dma.vmem_to_hbm [thread:$0]  %s234, 128, %s3, [#allocation4]
    $region29: #{tpu_custom_call.1} parent=1 // pred_fallthru
      _
    // Predicated region
    $region30: #{tpu_custom_call.1} parent=1 // pred_check
      _
    $region31: #{tpu_custom_call.1} parent=1 // pred_check_branch
      %238 = sbr.rel (0) target = $region33
    $region32: #{tpu_custom_call.1} parent=1 // pred_region
      %239 = dma.done [#allocation4], 128
    $region33: #{tpu_custom_call.1} parent=1 // pred_fallthru
      _
    %240 = vsyncpa [#allocation3], 1
    %241 = vsyncpa [#allocation6], 1
    %242 = vsyncpa [#allocation4], 1

</llo_original>
